<compile_context>
chip_gen: v6e
topology: v6e:2x2x1
jax: 0.10.0
libtpu: 0.0.40
codegen_flags: <defaults>
</compile_context>

<pallas_src>
import numpy as np
import jax
import jax.numpy as jnp
from jax.experimental import pallas as pl
from jax.experimental.pallas import tpu as pltpu

# ---------------- architecture constants (representative DCEC config) ----------------
EMBEDDED_DIM = 32
FEATURES_CHANNELS = [16, 32]        # encoder channels; decoder mirrors them in reverse
INPUT_NC = 1
LEAKY_NSLOPE = 0.2

C1 = FEATURES_CHANNELS[-1]          # 32  (deconv-1 in-channels)
C2 = FEATURES_CHANNELS[0]           # 16  (deconv-1 out / deconv-2 in channels)
C3 = INPUT_NC                       # 1
H1 = W1 = 4                         # bottleneck spatial (encoder: 16 -> 8 -> 4)
H2 = W2 = 8                         # after deconv 1
H3 = W3 = 16                        # after deconv 2 (reconstruction)
FEATURES_IN = C1 * H1 * W1          # 512
KS, STRIDE, PAD, OUT_PAD = 3, 2, 1, 1


# ---------------------------------------------------------------------------
# Fused decoder kernel
# ---------------------------------------------------------------------------
def _decoder_fused_kernel(z_ref, w1_ref, b1_ref, v0_ref, v1_ref, b2_ref,
                          o_ref, xa_ref, xb_ref):
    B = z_ref.shape[0]
    blk = W2 * C2                                     # 128 lanes per (b, h) image row

    # ---- de-embedding Linear composed with deconv-1: a single lane-dense GEMM ----
    # a1[b, h*128 + w*16 + c] = pre-activation of deconv-1 output pixel (b, c, h, w)
    a1 = jnp.dot(z_ref[...], w1_ref[...], preferred_element_type=jnp.float32) + b1_ref[...]
    # TODO(synk): Dropout is identity at inference (eval); training-mode masking not implemented.
    a1 = jnp.where(a1 >= 0, a1, LEAKY_NSLOPE * a1)    # LeakyReLU(0.2)

    # ---- relayout into the deconv-2 operand layout: rows=(b, ih), lanes=(iw, c).
    #      xa holds input row ih = m     (vertical tap dh = 0)
    #      xb holds input row ih = m + 1 (vertical tap dh = 1); its last row per batch
    #      stays zero (pixels below the image).  Static single-row copies only. ----
    xb_ref[...] = jnp.zeros_like(xb_ref)
    for b in range(B):
        for h in range(H2):
            row = a1[b:b + 1, h * blk:(h + 1) * blk]            # (1, 128), lane aligned
            xa_ref[b * H2 + h:b * H2 + h + 1, :] = row
            if h >= 1:
                xb_ref[b * H2 + h - 1:b * H2 + h, :] = row

    # ---- deconv-2 (phase decomposed; taps folded into v0/v1) + Sigmoid ----
    for b in range(B):
        xa = xa_ref[b * H2:(b + 1) * H2, :]                     # (8, 128)
        xb = xb_ref[b * H2:(b + 1) * H2, :]                     # (8, 128)
        y = (jnp.dot(xa, v0_ref[...], preferred_element_type=jnp.float32)
             + jnp.dot(xb, v1_ref[...], preferred_element_type=jnp.float32)
             + b2_ref[...])                                     # (8, 32) = (m, ph*16+ow)
        # exact sigmoid (keeps the output strictly inside [0, 1])
        o_ref[b * H2:(b + 1) * H2, :] = 1.0 / (1.0 + jnp.exp(-y))


def decoder_forward(kparams, z):
    """Fused decoder forward.  Returns the reconstruction in NCHW (B, 1, 16, 16)."""
    B = z.shape[0]
    out = pl.pallas_call(
        _decoder_fused_kernel,
        out_shape=jax.ShapeDtypeStruct((B * H2, 2 * W3), jnp.float32),
        scratch_shapes=[
            pltpu.VMEM((B * H2, W2 * C2), jnp.float32),   # xa: deconv-2 rows, tap dh=0
            pltpu.VMEM((B * H2, W2 * C2), jnp.float32),   # xb: deconv-2 rows, tap dh=1
        ],
    )(z, kparams["w1big"], kparams["b1big"],
      kparams["v0"], kparams["v1"], kparams["b2"])
    # (B*8, 32) row-major == (b, m, ph, ow) == NCHW (B, 1, 2m+ph, ow): free reshape.
    return out.reshape(B, INPUT_NC, H3, W3)


# ---------------------------------------------------------------------------
# Parameters: PyTorch-layout synthetic init + one-time kernel-layout preparation
# ---------------------------------------------------------------------------
def init_decoder_params(key):
    """Synthetic parameters in PyTorch-equivalent layouts (Linear used as z @ W + b,
    ConvTranspose2d weights as (Cin, Cout, KH, KW))."""
    k1, k2, k3, k4, k5, k6 = jax.random.split(key, 6)
    s = 0.05
    return {
        "lin_w": s * jax.random.normal(k1, (EMBEDDED_DIM, FEATURES_IN), jnp.float32),
        "lin_b": s * jax.random.normal(k2, (FEATURES_IN,), jnp.float32),
        "ct1_w": s * jax.random.normal(k3, (C1, C2, KS, KS), jnp.float32),
        "ct1_b": s * jax.random.normal(k4, (C2,), jnp.float32),
        "ct2_w": s * jax.random.normal(k5, (C2, C3, KS, KS), jnp.float32),
        "ct2_b": s * jax.random.normal(k6, (C3,), jnp.float32),
    }


def prepare_decoder_params(params):
    """One-time re-layout of the PyTorch-style weights into the fused-kernel layout.

    ConvTranspose2d (stride 2, k 3, pad 1, out_pad 1) relation used throughout:
        out[oh, ow] += x[ih, iw] * w[ci, co, kh, kw]   with   oh = 2*ih - 1 + kh,
                                                              ow = 2*iw - 1 + kw.
    """
    wl = np.asarray(params["lin_w"], np.float32)      # (32, 512)
    bl = np.asarray(params["lin_b"], np.float32)      # (512,)
    w1 = np.asarray(params["ct1_w"], np.float32)      # (32, 16, 3, 3)
    b1 = np.asarray(params["ct1_b"], np.float32)      # (16,)
    w2 = np.asarray(params["ct2_w"], np.float32)      # (16, 1, 3, 3)
    b2 = np.asarray(params["ct2_b"], np.float32)      # (1,)

    # deconv-1 as a dense matrix: flattened NCHW bottleneck (C1*H1*W1 = 512)
    #   -> flattened deconv-1 output ordered (h, w, c): (H2*W2*C2 = 1024)
    M1 = np.zeros((C1 * H1 * W1, H2 * W2 * C2), np.float32)
    for ih in range(H1):
        for iw in range(W1):
            for kh in range(KS):
                for kw in range(KS):
                    oh = STRIDE * ih - PAD + kh
                    ow = STRIDE * iw - PAD + kw
                    if 0 <= oh < H2 and 0 <= ow < W2:
                        rows = np.arange(C1) * (H1 * W1) + ih * W1 + iw
                        cols = (oh * W2 + ow) * C2 + np.arange(C2)
                        M1[np.ix_(rows, cols)] += w1[:, :, kh, kw]
    # compose with the de-embedding Linear (both are linear maps of z)
    w1big = wl @ M1                                   # (32, 1024)
    b1big = bl @ M1 + np.tile(b1, H2 * W2)            # (1024,)

    # deconv-2: fold horizontal taps and both output phases into two block-structured
    # matrices, one per vertical tap dh:
    #   V[dh][iw*C2 + c, ph*W3 + ow] = w2[c, 0, ph + 1 - 2*dh, ow + 1 - 2*iw]
    V = np.zeros((2, W2 * C2, 2 * W3), np.float32)
    for dh in range(2):
        for ph in range(2):
            kh = ph + 1 - 2 * dh
            if not (0 <= kh < KS):
                continue
            for iw in range(W2):
                for kw in range(KS):
                    ow = STRIDE * iw - PAD + kw
                    if 0 <= ow < W3:
                        V[dh, iw * C2 + np.arange(C2), ph * W3 + ow] += w2[:, 0, kh, kw]

    return {
        "w1big": jnp.asarray(w1big),
        "b1big": jnp.asarray(b1big.reshape(1, -1)),
        "v0": jnp.asarray(V[0]),
        "v1": jnp.asarray(V[1]),
        "b2": jnp.full((1, 2 * W3), float(b2[0]), jnp.float32),
    }


# ---------------------------------------------------------------------------
# Plain-JAX reference (exact PyTorch semantics) -- used only for validation
# ---------------------------------------------------------------------------
def _conv_transpose2d_ref(x_nhwc, w_torch, b, *, stride, padding, output_padding):
    B, H, W, Cin = x_nhwc.shape
    _, Cout, KH, KW = w_torch.shape
    Hd = (H - 1) * stride + 1
    Wd = (W - 1) * stride + 1
    xd = jnp.zeros((B, Hd, Wd, Cin), x_nhwc.dtype).at[:, ::stride, ::stride, :].set(x_nhwc)
    lo = KH - 1 - padding
    hi = KH - 1 - padding + output_padding
    xp = jnp.pad(xd, ((0, 0), (lo, hi), (lo, hi), (0, 0)))
    Ho = (H - 1) * stride - 2 * padding + KH + output_padding
    Wo = (W - 1) * stride - 2 * padding + KW + output_padding
    w_conv = jnp.transpose(w_torch[:, :, ::-1, ::-1], (2, 3, 0, 1))     # (KH,KW,Cin,Cout)
    patches = [xp[:, kh:kh + Ho, kw:kw + Wo, :] for kh in range(KH) for kw in range(KW)]
    xcol = jnp.concatenate(patches, axis=-1).reshape(B * Ho * Wo, KH * KW * Cin)
    out = xcol @ w_conv.reshape(KH * KW * Cin, Cout) + b
    return out.reshape(B, Ho, Wo, Cout)


def decoder_forward_ref(params, z):
    h = z @ params["lin_w"] + params["lin_b"]
    B = z.shape[0]
    x = h.reshape(B, C1, H1, W1)                     # torch .view -> NCHW
    x = jnp.transpose(x, (0, 2, 3, 1))               # NHWC
    x = _conv_transpose2d_ref(x, params["ct1_w"], params["ct1_b"],
                              stride=STRIDE, padding=PAD, output_padding=OUT_PAD)
    x = jnp.where(x >= 0, x, LEAKY_NSLOPE * x)       # Dropout(eval)=id, LeakyReLU(0.2)
    x = _conv_transpose2d_ref(x, params["ct2_w"], params["ct2_b"],
                              stride=STRIDE, padding=PAD, output_padding=OUT_PAD)
    x = 1.0 / (1.0 + jnp.exp(-x))                    # Sigmoid
    return jnp.transpose(x, (0, 3, 1, 2))            # NCHW


# ---------------------------------------------------------------------------
if __name__ == "__main__":
    key = jax.random.PRNGKey(0)
    pkey, zkey = jax.random.split(key)
    params = init_decoder_params(pkey)
    kparams = prepare_decoder_params(params)         # one-time weight re-layout
    z = jax.random.normal(zkey, (2, EMBEDDED_DIM), jnp.float32)

    fwd = jax.jit(decoder_forward)
    x_hat = fwd(kparams, z)
    jax.block_until_ready(x_hat)

    assert x_hat.shape == (2, INPUT_NC, H3, W3), x_hat.shape
    assert bool(jnp.all(jnp.isfinite(x_hat)))
    assert bool(jnp.all((x_hat >= 0.0) & (x_hat <= 1.0)))   # sigmoid output range

    # numerical check against the plain-JAX / PyTorch-semantics reference
    # (tolerance leaves room for TPU default-precision matmul passes)
    x_ref = decoder_forward_ref(params, z)
    max_err = float(jnp.max(jnp.abs(x_hat - x_ref)))
    assert max_err < 2e-3, f"max abs error vs reference: {max_err}"

    print("KERNEL_OK")
</pallas_src>

<mosaic_0001>
module attributes {stable_mosaic.version = 11 : i64} {
  func.func @_decoder_fused_kernel(%arg0: memref<2x32xf32, #tpu.memory_space<vmem>>, %arg1: memref<32x1024xf32, #tpu.memory_space<vmem>>, %arg2: memref<1x1024xf32, #tpu.memory_space<vmem>>, %arg3: memref<128x32xf32, #tpu.memory_space<vmem>>, %arg4: memref<128x32xf32, #tpu.memory_space<vmem>>, %arg5: memref<1x32xf32, #tpu.memory_space<vmem>>, %arg6: memref<16x32xf32, #tpu.memory_space<vmem>>, %arg7: memref<16x128xf32, #tpu.memory_space<vmem>>, %arg8: memref<16x128xf32, #tpu.memory_space<vmem>>) attributes {dimension_semantics = [], scalar_prefetch = 0 : i64, scratch_operands = 2 : i64, tpu.core_type = #tpu.core_type<tc>} {
    %c0 = arith.constant 0 : index
    %c0_0 = arith.constant 0 : index
    %0 = vector.load %arg0[%c0, %c0_0] : memref<2x32xf32, #tpu.memory_space<vmem>>, vector<2x32xf32>
    %c0_1 = arith.constant 0 : index
    %c0_2 = arith.constant 0 : index
    %1 = vector.load %arg1[%c0_1, %c0_2] : memref<32x1024xf32, #tpu.memory_space<vmem>>, vector<32x1024xf32>
    %cst = arith.constant dense<0.000000e+00> : vector<2x1024xf32>
    %2 = tpu.matmul %0, %1, %cst {dimension_numbers = #tpu.dot_dimension_numbers<[1], [0], [0], [1], [0, 0, 1, 1], [], []>} : vector<2x32xf32>, vector<32x1024xf32>, vector<2x1024xf32> -> vector<2x1024xf32>
    %c0_3 = arith.constant 0 : index
    %c0_4 = arith.constant 0 : index
    %3 = vector.load %arg2[%c0_3, %c0_4] : memref<1x1024xf32, #tpu.memory_space<vmem>>, vector<1x1024xf32>
    %4 = vector.broadcast %3 : vector<1x1024xf32> to vector<2x1024xf32>
    %5 = arith.addf %2, %4 : vector<2x1024xf32>
    %cst_5 = arith.constant 0.000000e+00 : f32
    %6 = vector.broadcast %cst_5 : f32 to vector<2x1024xf32>
    %7 = arith.cmpf oge, %5, %6 : vector<2x1024xf32>
    %cst_6 = arith.constant 2.000000e-01 : f32
    %8 = vector.broadcast %cst_6 : f32 to vector<2x1024xf32>
    %9 = arith.mulf %8, %5 : vector<2x1024xf32>
    %10 = arith.select %7, %5, %9 : vector<2x1024xi1>, vector<2x1024xf32>
    %cst_7 = arith.constant 0.000000e+00 : f32
    %11 = vector.broadcast %cst_7 : f32 to vector<16x128xf32>
    %c0_8 = arith.constant 0 : index
    %c0_9 = arith.constant 0 : index
    %12 = vector.load %arg8[%c0_8, %c0_9] : memref<16x128xf32, #tpu.memory_space<vmem>>, vector<16x128xf32>
    tpu.vector_store %arg8[%c0_8, %c0_9], %11 {strides = array<i32>} : memref<16x128xf32, #tpu.memory_space<vmem>>, vector<16x128xf32>,
    %13 = vector.extract_strided_slice %10 {offsets = [0, 0], sizes = [1, 128], strides = [1, 1]} : vector<2x1024xf32> to vector<1x128xf32>
    %c0_10 = arith.constant 0 : index
    %c0_11 = arith.constant 0 : index
    %14 = vector.load %arg7[%c0_10, %c0_11] : memref<16x128xf32, #tpu.memory_space<vmem>>, vector<1x128xf32>
    tpu.vector_store %arg7[%c0_10, %c0_11], %13 {strides = array<i32>} : memref<16x128xf32, #tpu.memory_space<vmem>>, vector<1x128xf32>,
    %15 = vector.extract_strided_slice %10 {offsets = [0, 128], sizes = [1, 128], strides = [1, 1]} : vector<2x1024xf32> to vector<1x128xf32>
    %c1 = arith.constant 1 : index
    %c0_12 = arith.constant 0 : index
    %16 = vector.load %arg7[%c1, %c0_12] : memref<16x128xf32, #tpu.memory_space<vmem>>, vector<1x128xf32>
    tpu.vector_store %arg7[%c1, %c0_12], %15 {strides = array<i32>} : memref<16x128xf32, #tpu.memory_space<vmem>>, vector<1x128xf32>,
    %c0_13 = arith.constant 0 : index
    %c0_14 = arith.constant 0 : index
    %17 = vector.load %arg8[%c0_13, %c0_14] : memref<16x128xf32, #tpu.memory_space<vmem>>, vector<1x128xf32>
    tpu.vector_store %arg8[%c0_13, %c0_14], %15 {strides = array<i32>} : memref<16x128xf32, #tpu.memory_space<vmem>>, vector<1x128xf32>,
    %18 = vector.extract_strided_slice %10 {offsets = [0, 256], sizes = [1, 128], strides = [1, 1]} : vector<2x1024xf32> to vector<1x128xf32>
    %c2 = arith.constant 2 : index
    %c0_15 = arith.constant 0 : index
    %19 = vector.load %arg7[%c2, %c0_15] : memref<16x128xf32, #tpu.memory_space<vmem>>, vector<1x128xf32>
    tpu.vector_store %arg7[%c2, %c0_15], %18 {strides = array<i32>} : memref<16x128xf32, #tpu.memory_space<vmem>>, vector<1x128xf32>,
    %c1_16 = arith.constant 1 : index
    %c0_17 = arith.constant 0 : index
    %20 = vector.load %arg8[%c1_16, %c0_17] : memref<16x128xf32, #tpu.memory_space<vmem>>, vector<1x128xf32>
    tpu.vector_store %arg8[%c1_16, %c0_17], %18 {strides = array<i32>} : memref<16x128xf32, #tpu.memory_space<vmem>>, vector<1x128xf32>,
    %21 = vector.extract_strided_slice %10 {offsets = [0, 384], sizes = [1, 128], strides = [1, 1]} : vector<2x1024xf32> to vector<1x128xf32>
    %c3 = arith.constant 3 : index
    %c0_18 = arith.constant 0 : index
    %22 = vector.load %arg7[%c3, %c0_18] : memref<16x128xf32, #tpu.memory_space<vmem>>, vector<1x128xf32>
    tpu.vector_store %arg7[%c3, %c0_18], %21 {strides = array<i32>} : memref<16x128xf32, #tpu.memory_space<vmem>>, vector<1x128xf32>,
    %c2_19 = arith.constant 2 : index
    %c0_20 = arith.constant 0 : index
    %23 = vector.load %arg8[%c2_19, %c0_20] : memref<16x128xf32, #tpu.memory_space<vmem>>, vector<1x128xf32>
    tpu.vector_store %arg8[%c2_19, %c0_20], %21 {strides = array<i32>} : memref<16x128xf32, #tpu.memory_space<vmem>>, vector<1x128xf32>,
    %24 = vector.extract_strided_slice %10 {offsets = [0, 512], sizes = [1, 128], strides = [1, 1]} : vector<2x1024xf32> to vector<1x128xf32>
    %c4 = arith.constant 4 : index
    %c0_21 = arith.constant 0 : index
    %25 = vector.load %arg7[%c4, %c0_21] : memref<16x128xf32, #tpu.memory_space<vmem>>, vector<1x128xf32>
    tpu.vector_store %arg7[%c4, %c0_21], %24 {strides = array<i32>} : memref<16x128xf32, #tpu.memory_space<vmem>>, vector<1x128xf32>,
    %c3_22 = arith.constant 3 : index
    %c0_23 = arith.constant 0 : index
    %26 = vector.load %arg8[%c3_22, %c0_23] : memref<16x128xf32, #tpu.memory_space<vmem>>, vector<1x128xf32>
    tpu.vector_store %arg8[%c3_22, %c0_23], %24 {strides = array<i32>} : memref<16x128xf32, #tpu.memory_space<vmem>>, vector<1x128xf32>,
    %27 = vector.extract_strided_slice %10 {offsets = [0, 640], sizes = [1, 128], strides = [1, 1]} : vector<2x1024xf32> to vector<1x128xf32>
    %c5 = arith.constant 5 : index
    %c0_24 = arith.constant 0 : index
    %28 = vector.load %arg7[%c5, %c0_24] : memref<16x128xf32, #tpu.memory_space<vmem>>, vector<1x128xf32>
    tpu.vector_store %arg7[%c5, %c0_24], %27 {strides = array<i32>} : memref<16x128xf32, #tpu.memory_space<vmem>>, vector<1x128xf32>,
    %c4_25 = arith.constant 4 : index
    %c0_26 = arith.constant 0 : index
    %29 = vector.load %arg8[%c4_25, %c0_26] : memref<16x128xf32, #tpu.memory_space<vmem>>, vector<1x128xf32>
    tpu.vector_store %arg8[%c4_25, %c0_26], %27 {strides = array<i32>} : memref<16x128xf32, #tpu.memory_space<vmem>>, vector<1x128xf32>,
    %30 = vector.extract_strided_slice %10 {offsets = [0, 768], sizes = [1, 128], strides = [1, 1]} : vector<2x1024xf32> to vector<1x128xf32>
    %c6 = arith.constant 6 : index
    %c0_27 = arith.constant 0 : index
    %31 = vector.load %arg7[%c6, %c0_27] : memref<16x128xf32, #tpu.memory_space<vmem>>, vector<1x128xf32>
    tpu.vector_store %arg7[%c6, %c0_27], %30 {strides = array<i32>} : memref<16x128xf32, #tpu.memory_space<vmem>>, vector<1x128xf32>,
    %c5_28 = arith.constant 5 : index
    %c0_29 = arith.constant 0 : index
    %32 = vector.load %arg8[%c5_28, %c0_29] : memref<16x128xf32, #tpu.memory_space<vmem>>, vector<1x128xf32>
    tpu.vector_store %arg8[%c5_28, %c0_29], %30 {strides = array<i32>} : memref<16x128xf32, #tpu.memory_space<vmem>>, vector<1x128xf32>,
    %33 = vector.extract_strided_slice %10 {offsets = [0, 896], sizes = [1, 128], strides = [1, 1]} : vector<2x1024xf32> to vector<1x128xf32>
    %c7 = arith.constant 7 : index
    %c0_30 = arith.constant 0 : index
    %34 = vector.load %arg7[%c7, %c0_30] : memref<16x128xf32, #tpu.memory_space<vmem>>, vector<1x128xf32>
    tpu.vector_store %arg7[%c7, %c0_30], %33 {strides = array<i32>} : memref<16x128xf32, #tpu.memory_space<vmem>>, vector<1x128xf32>,
    %c6_31 = arith.constant 6 : index
    %c0_32 = arith.constant 0 : index
    %35 = vector.load %arg8[%c6_31, %c0_32] : memref<16x128xf32, #tpu.memory_space<vmem>>, vector<1x128xf32>
    tpu.vector_store %arg8[%c6_31, %c0_32], %33 {strides = array<i32>} : memref<16x128xf32, #tpu.memory_space<vmem>>, vector<1x128xf32>,
    %36 = vector.extract_strided_slice %10 {offsets = [1, 0], sizes = [1, 128], strides = [1, 1]} : vector<2x1024xf32> to vector<1x128xf32>
    %c8 = arith.constant 8 : index
    %c0_33 = arith.constant 0 : index
    %37 = vector.load %arg7[%c8, %c0_33] : memref<16x128xf32, #tpu.memory_space<vmem>>, vector<1x128xf32>
    tpu.vector_store %arg7[%c8, %c0_33], %36 {strides = array<i32>} : memref<16x128xf32, #tpu.memory_space<vmem>>, vector<1x128xf32>,
    %38 = vector.extract_strided_slice %10 {offsets = [1, 128], sizes = [1, 128], strides = [1, 1]} : vector<2x1024xf32> to vector<1x128xf32>
    %c9 = arith.constant 9 : index
    %c0_34 = arith.constant 0 : index
    %39 = vector.load %arg7[%c9, %c0_34] : memref<16x128xf32, #tpu.memory_space<vmem>>, vector<1x128xf32>
    tpu.vector_store %arg7[%c9, %c0_34], %38 {strides = array<i32>} : memref<16x128xf32, #tpu.memory_space<vmem>>, vector<1x128xf32>,
    %c8_35 = arith.constant 8 : index
    %c0_36 = arith.constant 0 : index
    %40 = vector.load %arg8[%c8_35, %c0_36] : memref<16x128xf32, #tpu.memory_space<vmem>>, vector<1x128xf32>
    tpu.vector_store %arg8[%c8_35, %c0_36], %38 {strides = array<i32>} : memref<16x128xf32, #tpu.memory_space<vmem>>, vector<1x128xf32>,
    %41 = vector.extract_strided_slice %10 {offsets = [1, 256], sizes = [1, 128], strides = [1, 1]} : vector<2x1024xf32> to vector<1x128xf32>
    %c10 = arith.constant 10 : index
    %c0_37 = arith.constant 0 : index
    %42 = vector.load %arg7[%c10, %c0_37] : memref<16x128xf32, #tpu.memory_space<vmem>>, vector<1x128xf32>
    tpu.vector_store %arg7[%c10, %c0_37], %41 {strides = array<i32>} : memref<16x128xf32, #tpu.memory_space<vmem>>, vector<1x128xf32>,
    %c9_38 = arith.constant 9 : index
    %c0_39 = arith.constant 0 : index
    %43 = vector.load %arg8[%c9_38, %c0_39] : memref<16x128xf32, #tpu.memory_space<vmem>>, vector<1x128xf32>
    tpu.vector_store %arg8[%c9_38, %c0_39], %41 {strides = array<i32>} : memref<16x128xf32, #tpu.memory_space<vmem>>, vector<1x128xf32>,
    %44 = vector.extract_strided_slice %10 {offsets = [1, 384], sizes = [1, 128], strides = [1, 1]} : vector<2x1024xf32> to vector<1x128xf32>
    %c11 = arith.constant 11 : index
    %c0_40 = arith.constant 0 : index
    %45 = vector.load %arg7[%c11, %c0_40] : memref<16x128xf32, #tpu.memory_space<vmem>>, vector<1x128xf32>
    tpu.vector_store %arg7[%c11, %c0_40], %44 {strides = array<i32>} : memref<16x128xf32, #tpu.memory_space<vmem>>, vector<1x128xf32>,
    %c10_41 = arith.constant 10 : index
    %c0_42 = arith.constant 0 : index
    %46 = vector.load %arg8[%c10_41, %c0_42] : memref<16x128xf32, #tpu.memory_space<vmem>>, vector<1x128xf32>
    tpu.vector_store %arg8[%c10_41, %c0_42], %44 {strides = array<i32>} : memref<16x128xf32, #tpu.memory_space<vmem>>, vector<1x128xf32>,
    %47 = vector.extract_strided_slice %10 {offsets = [1, 512], sizes = [1, 128], strides = [1, 1]} : vector<2x1024xf32> to vector<1x128xf32>
    %c12 = arith.constant 12 : index
    %c0_43 = arith.constant 0 : index
    %48 = vector.load %arg7[%c12, %c0_43] : memref<16x128xf32, #tpu.memory_space<vmem>>, vector<1x128xf32>
    tpu.vector_store %arg7[%c12, %c0_43], %47 {strides = array<i32>} : memref<16x128xf32, #tpu.memory_space<vmem>>, vector<1x128xf32>,
    %c11_44 = arith.constant 11 : index
    %c0_45 = arith.constant 0 : index
    %49 = vector.load %arg8[%c11_44, %c0_45] : memref<16x128xf32, #tpu.memory_space<vmem>>, vector<1x128xf32>
    tpu.vector_store %arg8[%c11_44, %c0_45], %47 {strides = array<i32>} : memref<16x128xf32, #tpu.memory_space<vmem>>, vector<1x128xf32>,
    %50 = vector.extract_strided_slice %10 {offsets = [1, 640], sizes = [1, 128], strides = [1, 1]} : vector<2x1024xf32> to vector<1x128xf32>
    %c13 = arith.constant 13 : index
    %c0_46 = arith.constant 0 : index
    %51 = vector.load %arg7[%c13, %c0_46] : memref<16x128xf32, #tpu.memory_space<vmem>>, vector<1x128xf32>
    tpu.vector_store %arg7[%c13, %c0_46], %50 {strides = array<i32>} : memref<16x128xf32, #tpu.memory_space<vmem>>, vector<1x128xf32>,
    %c12_47 = arith.constant 12 : index
    %c0_48 = arith.constant 0 : index
    %52 = vector.load %arg8[%c12_47, %c0_48] : memref<16x128xf32, #tpu.memory_space<vmem>>, vector<1x128xf32>
    tpu.vector_store %arg8[%c12_47, %c0_48], %50 {strides = array<i32>} : memref<16x128xf32, #tpu.memory_space<vmem>>, vector<1x128xf32>,
    %53 = vector.extract_strided_slice %10 {offsets = [1, 768], sizes = [1, 128], strides = [1, 1]} : vector<2x1024xf32> to vector<1x128xf32>
    %c14 = arith.constant 14 : index
    %c0_49 = arith.constant 0 : index
    %54 = vector.load %arg7[%c14, %c0_49] : memref<16x128xf32, #tpu.memory_space<vmem>>, vector<1x128xf32>
    tpu.vector_store %arg7[%c14, %c0_49], %53 {strides = array<i32>} : memref<16x128xf32, #tpu.memory_space<vmem>>, vector<1x128xf32>,
    %c13_50 = arith.constant 13 : index
    %c0_51 = arith.constant 0 : index
    %55 = vector.load %arg8[%c13_50, %c0_51] : memref<16x128xf32, #tpu.memory_space<vmem>>, vector<1x128xf32>
    tpu.vector_store %arg8[%c13_50, %c0_51], %53 {strides = array<i32>} : memref<16x128xf32, #tpu.memory_space<vmem>>, vector<1x128xf32>,
    %56 = vector.extract_strided_slice %10 {offsets = [1, 896], sizes = [1, 128], strides = [1, 1]} : vector<2x1024xf32> to vector<1x128xf32>
    %c15 = arith.constant 15 : index
    %c0_52 = arith.constant 0 : index
    %57 = vector.load %arg7[%c15, %c0_52] : memref<16x128xf32, #tpu.memory_space<vmem>>, vector<1x128xf32>
    tpu.vector_store %arg7[%c15, %c0_52], %56 {strides = array<i32>} : memref<16x128xf32, #tpu.memory_space<vmem>>, vector<1x128xf32>,
    %c14_53 = arith.constant 14 : index
    %c0_54 = arith.constant 0 : index
    %58 = vector.load %arg8[%c14_53, %c0_54] : memref<16x128xf32, #tpu.memory_space<vmem>>, vector<1x128xf32>
    tpu.vector_store %arg8[%c14_53, %c0_54], %56 {strides = array<i32>} : memref<16x128xf32, #tpu.memory_space<vmem>>, vector<1x128xf32>,
    %c0_55 = arith.constant 0 : index
    %c0_56 = arith.constant 0 : index
    %59 = vector.load %arg7[%c0_55, %c0_56] : memref<16x128xf32, #tpu.memory_space<vmem>>, vector<8x128xf32>
    %c0_57 = arith.constant 0 : index
    %c0_58 = arith.constant 0 : index
    %60 = vector.load %arg8[%c0_57, %c0_58] : memref<16x128xf32, #tpu.memory_space<vmem>>, vector<8x128xf32>
    %c0_59 = arith.constant 0 : index
    %c0_60 = arith.constant 0 : index
    %61 = vector.load %arg3[%c0_59, %c0_60] : memref<128x32xf32, #tpu.memory_space<vmem>>, vector<128x32xf32>
    %cst_61 = arith.constant dense<0.000000e+00> : vector<8x32xf32>
    %62 = tpu.matmul %59, %61, %cst_61 {dimension_numbers = #tpu.dot_dimension_numbers<[1], [0], [0], [1], [0, 0, 1, 1], [], []>} : vector<8x128xf32>, vector<128x32xf32>, vector<8x32xf32> -> vector<8x32xf32>
    %c0_62 = arith.constant 0 : index
    %c0_63 = arith.constant 0 : index
    %63 = vector.load %arg4[%c0_62, %c0_63] : memref<128x32xf32, #tpu.memory_space<vmem>>, vector<128x32xf32>
    %cst_64 = arith.constant dense<0.000000e+00> : vector<8x32xf32>
    %64 = tpu.matmul %60, %63, %cst_64 {dimension_numbers = #tpu.dot_dimension_numbers<[1], [0], [0], [1], [0, 0, 1, 1], [], []>} : vector<8x128xf32>, vector<128x32xf32>, vector<8x32xf32> -> vector<8x32xf32>
    %65 = arith.addf %62, %64 : vector<8x32xf32>
    %c0_65 = arith.constant 0 : index
    %c0_66 = arith.constant 0 : index
    %66 = vector.load %arg5[%c0_65, %c0_66] : memref<1x32xf32, #tpu.memory_space<vmem>>, vector<1x32xf32>
    %67 = vector.broadcast %66 : vector<1x32xf32> to vector<8x32xf32>
    %68 = arith.addf %65, %67 : vector<8x32xf32>
    %cst_67 = arith.constant 0.000000e+00 : f32
    %69 = vector.broadcast %cst_67 : f32 to vector<8x32xf32>
    %70 = arith.subf %69, %68 : vector<8x32xf32>
    %71 = math.exp %70 : vector<8x32xf32>
    %cst_68 = arith.constant 1.000000e+00 : f32
    %72 = vector.broadcast %cst_68 : f32 to vector<8x32xf32>
    %73 = arith.addf %72, %71 : vector<8x32xf32>
    %cst_69 = arith.constant 1.000000e+00 : f32
    %74 = vector.broadcast %cst_69 : f32 to vector<8x32xf32>
    %75 = arith.divf %74, %73 : vector<8x32xf32>
    %c0_70 = arith.constant 0 : index
    %c0_71 = arith.constant 0 : index
    %76 = vector.load %arg6[%c0_70, %c0_71] : memref<16x32xf32, #tpu.memory_space<vmem>>, vector<8x32xf32>
    tpu.vector_store %arg6[%c0_70, %c0_71], %75 {strides = array<i32>} : memref<16x32xf32, #tpu.memory_space<vmem>>, vector<8x32xf32>,
    %c8_72 = arith.constant 8 : index
    %c0_73 = arith.constant 0 : index
    %77 = vector.load %arg7[%c8_72, %c0_73] : memref<16x128xf32, #tpu.memory_space<vmem>>, vector<8x128xf32>
    %c8_74 = arith.constant 8 : index
    %c0_75 = arith.constant 0 : index
    %78 = vector.load %arg8[%c8_74, %c0_75] : memref<16x128xf32, #tpu.memory_space<vmem>>, vector<8x128xf32>
    %c0_76 = arith.constant 0 : index
    %c0_77 = arith.constant 0 : index
    %79 = vector.load %arg3[%c0_76, %c0_77] : memref<128x32xf32, #tpu.memory_space<vmem>>, vector<128x32xf32>
    %cst_78 = arith.constant dense<0.000000e+00> : vector<8x32xf32>
    %80 = tpu.matmul %77, %79, %cst_78 {dimension_numbers = #tpu.dot_dimension_numbers<[1], [0], [0], [1], [0, 0, 1, 1], [], []>} : vector<8x128xf32>, vector<128x32xf32>, vector<8x32xf32> -> vector<8x32xf32>
    %c0_79 = arith.constant 0 : index
    %c0_80 = arith.constant 0 : index
    %81 = vector.load %arg4[%c0_79, %c0_80] : memref<128x32xf32, #tpu.memory_space<vmem>>, vector<128x32xf32>
    %cst_81 = arith.constant dense<0.000000e+00> : vector<8x32xf32>
    %82 = tpu.matmul %78, %81, %cst_81 {dimension_numbers = #tpu.dot_dimension_numbers<[1], [0], [0], [1], [0, 0, 1, 1], [], []>} : vector<8x128xf32>, vector<128x32xf32>, vector<8x32xf32> -> vector<8x32xf32>
    %83 = arith.addf %80, %82 : vector<8x32xf32>
    %c0_82 = arith.constant 0 : index
    %c0_83 = arith.constant 0 : index
    %84 = vector.load %arg5[%c0_82, %c0_83] : memref<1x32xf32, #tpu.memory_space<vmem>>, vector<1x32xf32>
    %85 = vector.broadcast %84 : vector<1x32xf32> to vector<8x32xf32>
    %86 = arith.addf %83, %85 : vector<8x32xf32>
    %cst_84 = arith.constant 0.000000e+00 : f32
    %87 = vector.broadcast %cst_84 : f32 to vector<8x32xf32>
    %88 = arith.subf %87, %86 : vector<8x32xf32>
    %89 = math.exp %88 : vector<8x32xf32>
    %cst_85 = arith.constant 1.000000e+00 : f32
    %90 = vector.broadcast %cst_85 : f32 to vector<8x32xf32>
    %91 = arith.addf %90, %89 : vector<8x32xf32>
    %cst_86 = arith.constant 1.000000e+00 : f32
    %92 = vector.broadcast %cst_86 : f32 to vector<8x32xf32>
    %93 = arith.divf %92, %91 : vector<8x32xf32>
    %c8_87 = arith.constant 8 : index
    %c0_88 = arith.constant 0 : index
    %94 = vector.load %arg6[%c8_87, %c0_88] : memref<16x32xf32, #tpu.memory_space<vmem>>, vector<8x32xf32>
    tpu.vector_store %arg6[%c8_87, %c0_88], %93 {strides = array<i32>} : memref<16x32xf32, #tpu.memory_space<vmem>>, vector<8x32xf32>,
    return
  }
}

</mosaic_0001>

<llo_original>
// kernel: decoder_forward.1
$region0: #{decoder_forward.1}
  #allocation0 [shape = 'u32[]', space=smem, size = 0x4, offset = 0x4, fixed_abs, tag = 'smem constant byte address 0x4 - core index']
  #allocation1 [shape = 'u32[144,128]{1,0:T(1,128)}', space=vmem, size = 0x12000, scoped, tag = 'internal scratch']
  #allocation2 [shape = 'f32[16,128]{1,0:T(8,128)}', space=vmem, size = 0x2000, scoped, tag = 'scratch operand']
  #allocation3 [shape = 'f32[16,128]{1,0:T(8,128)}', space=vmem, size = 0x2000, scoped, tag = 'scratch operand']
  %s0 = inlined_call_operand.vmem [shape: f32[2,32], index: 0, kind: input, shape index: {}]
  %s1 = inlined_call_operand.vmem [shape: f32[32,1024], index: 1, kind: input, shape index: {}]
  %s2 = inlined_call_operand.vmem [shape: f32[1,1024], index: 2, kind: input, shape index: {}]
  %s3 = inlined_call_operand.vmem [shape: f32[128,32], index: 3, kind: input, shape index: {}]
  %s4 = inlined_call_operand.vmem [shape: f32[128,32], index: 4, kind: input, shape index: {}]
  %s5 = inlined_call_operand.vmem [shape: f32[1,32], index: 5, kind: input, shape index: {}]
  %s6 = inlined_call_operand.vmem [shape: f32[16,32], index: 6, kind: output, shape index: {}]
  %s7 = sld [smem:[#allocation0]]
  $region34: #{decoder_forward.1} parent=0
    _
  %s9 = ssub.s32 1, %s7
  %s10 = scalar_select 0, %s9, %s7
  // Predicated region
  $region2: #{decoder_forward.1} parent=0 // pred_check
    _
  $region3: #{decoder_forward.1} parent=0 // pred_check_branch
    %12 = sbr.rel (0) target = $region5
  $region4: #{decoder_forward.1} parent=0 // pred_region
    _
  $region5: #{decoder_forward.1} parent=0 // pred_fallthru
    _
  // Predicated region
  $region6: #{decoder_forward.1} parent=0 // pred_check
    _
  $region7: #{decoder_forward.1} parent=0 // pred_check_branch
    %14 = sbr.rel (0) target = $region9
  $region8: #{decoder_forward.1} parent=0 // pred_region
    _
  $region9: #{decoder_forward.1} parent=0 // pred_fallthru
    _
  // Predicated region
  $region10: #{decoder_forward.1} parent=0 // pred_check
    _
  $region11: #{decoder_forward.1} parent=0 // pred_check_branch
    %16 = sbr.rel (0) target = $region13
  $region12: #{decoder_forward.1} parent=0 // pred_region
    _
  $region13: #{decoder_forward.1} parent=0 // pred_fallthru
    _
  // Predicated region
  $region14: #{decoder_forward.1} parent=0 // pred_check
    _
  $region15: #{decoder_forward.1} parent=0 // pred_check_branch
    %18 = sbr.rel (0) target = $region17
  $region16: #{decoder_forward.1} parent=0 // pred_region
    _
  $region17: #{decoder_forward.1} parent=0 // pred_fallthru
    _
  // Predicated region
  $region18: #{decoder_forward.1} parent=0 // pred_check
    _
  $region19: #{decoder_forward.1} parent=0 // pred_check_branch
    %20 = sbr.rel (0) target = $region21
  $region20: #{decoder_forward.1} parent=0 // pred_region
    _
  $region21: #{decoder_forward.1} parent=0 // pred_fallthru
    _
  // Predicated region
  $region22: #{decoder_forward.1} parent=0 // pred_check
    _
  $region23: #{decoder_forward.1} parent=0 // pred_check_branch
    %22 = sbr.rel (0) target = $region25
  $region24: #{decoder_forward.1} parent=0 // pred_region
    _
  $region25: #{decoder_forward.1} parent=0 // pred_fallthru
    _
  %v23 = vld [vmem:[%s0] sm:$0x3]
  %v24 = vld [vmem:[%s1] sm:$0xff]
  %v25 = vld [vmem:[%s1 + $0x8] sm:$0xff]
  %v26 = vld [vmem:[%s1 + $0x10] sm:$0xff]
  %v27 = vld [vmem:[%s1 + $0x18] sm:$0xff]
  %v28 = vld [vmem:[%s1 + $0x20] sm:$0xff]
  %v29 = vld [vmem:[%s1 + $0x28] sm:$0xff]
  %v30 = vld [vmem:[%s1 + $0x30] sm:$0xff]
  %v31 = vld [vmem:[%s1 + $0x38] sm:$0xff]
  %v32 = vld [vmem:[%s1 + $0x40] sm:$0xff]
  %v33 = vld [vmem:[%s1 + $0x48] sm:$0xff]
  %v34 = vld [vmem:[%s1 + $0x50] sm:$0xff]
  %v35 = vld [vmem:[%s1 + $0x58] sm:$0xff]
  %v36 = vld [vmem:[%s1 + $0x60] sm:$0xff]
  %v37 = vld [vmem:[%s1 + $0x68] sm:$0xff]
  %v38 = vld [vmem:[%s1 + $0x70] sm:$0xff]
  %v39 = vld [vmem:[%s1 + $0x78] sm:$0xff]
  %v40 = vld [vmem:[%s1 + $0x80] sm:$0xff]
  %v41 = vld [vmem:[%s1 + $0x88] sm:$0xff]
  %v42 = vld [vmem:[%s1 + $0x90] sm:$0xff]
  %v43 = vld [vmem:[%s1 + $0x98] sm:$0xff]
  %v44 = vld [vmem:[%s1 + $0xa0] sm:$0xff]
  %v45 = vld [vmem:[%s1 + $0xa8] sm:$0xff]
  %v46 = vld [vmem:[%s1 + $0xb0] sm:$0xff]
  %v47 = vld [vmem:[%s1 + $0xb8] sm:$0xff]
  %v48 = vld [vmem:[%s1 + $0xc0] sm:$0xff]
  %v49 = vld [vmem:[%s1 + $0xc8] sm:$0xff]
  %v50 = vld [vmem:[%s1 + $0xd0] sm:$0xff]
  %v51 = vld [vmem:[%s1 + $0xd8] sm:$0xff]
  %v52 = vld [vmem:[%s1 + $0xe0] sm:$0xff]
  %v53 = vld [vmem:[%s1 + $0xe8] sm:$0xff]
  %v54 = vld [vmem:[%s1 + $0xf0] sm:$0xff]
  %v55 = vld [vmem:[%s1 + $0xf8] sm:$0xff]
  %v56 = vld [vmem:[%s2] sm:$0xff]
  %v58 = vlaneseq
  %v59 = vshrl.u32 %v58, 7
  %v60 = vsub.s32 0, %v59
  %v61 = vrot.slane %v56, %v60
  %v62 = vlaneseq
  %v63 = vshrl.u32 %v62, 7
  %v64 = vsub.s32 1, %v63
  %v65 = vrot.slane %v56, %v64
  %v66 = vlaneseq
  %v67 = vshrl.u32 %v66, 7
  %v68 = vsub.s32 2, %v67
  %v69 = vrot.slane %v56, %v68
  %v70 = vlaneseq
  %v71 = vshrl.u32 %v70, 7
  %v72 = vsub.s32 3, %v71
  %v73 = vrot.slane %v56, %v72
  %v74 = vlaneseq
  %v75 = vshrl.u32 %v74, 7
  %v76 = vsub.s32 4, %v75
  %v77 = vrot.slane %v56, %v76
  %v78 = vlaneseq
  %v79 = vshrl.u32 %v78, 7
  %v80 = vsub.s32 5, %v79
  %v81 = vrot.slane %v56, %v80
  %v82 = vlaneseq
  %v83 = vshrl.u32 %v82, 7
  %v84 = vsub.s32 6, %v83
  %v85 = vrot.slane %v56, %v84
  %v86 = vlaneseq
  %v87 = vshrl.u32 %v86, 7
  %v88 = vsub.s32 7, %v87
  %v89 = vrot.slane %v56, %v88
  %vm98 = vcmask 261120
  %v100 = vsel %vm98, %v23, 0
  %102 = vmatprep.subr.mxu0 0.0
  %103 = vmatpush1.msra.mxu0 0.0
  %104 = vmatprep.subr.mxu0 0.0
  %105 = vmatpush1.msra.mxu0 0.0
  %106 = vmatprep.subr.mxu0 0.0
  %107 = vmatpush1.msra.mxu0 0.0
  %108 = vmatprep.subr.mxu0 0.0
  %109 = vmatpush1.msra.mxu0 0.0
  %110 = vmatprep.subr.mxu0 0.0
  %111 = vmatpush1.msra.mxu0 0.0
  %112 = vmatprep.subr.mxu0 0.0
  %113 = vmatpush1.msra.mxu0 0.0
  %114 = vmatprep.subr.mxu0 0.0
  %115 = vmatpush1.msra.mxu0 0.0
  %116 = vmatprep.subr.mxu0 0.0
  %117 = vmatpush1.msra.mxu0 0.0
  %118 = vmatprep.subr.mxu0 0.0
  %119 = vmatpush1.msra.mxu0 0.0
  %120 = vmatprep.subr.mxu0 0.0
  %121 = vmatpush1.msra.mxu0 0.0
  %122 = vmatprep.subr.mxu0 0.0
  %123 = vmatpush1.msra.mxu0 0.0
  %124 = vmatprep.subr.mxu0 0.0
  %125 = vmatpush1.msra.mxu0 0.0
  %126 = vmatprep.subr.mxu0 %v49
  %127 = vmatpush1.msra.mxu0 %v48
  %128 = vmatprep.subr.mxu0 %v41
  %129 = vmatpush1.msra.mxu0 %v40
  %130 = vmatprep.subr.mxu0 %v33
  %131 = vmatpush1.msra.mxu0 %v32
  %132 = vmatprep.subr.mxu0 %v25
  %133 = vmatpush1.msra.mxu0 %v24
  %134 = vmatprep.subr.mxu0 0.0
  %135 = vmatpush2.msra.mxu0 0.0
  %136 = vmatprep.subr.mxu0 0.0
  %137 = vmatpush2.msra.mxu0 0.0
  %138 = vmatprep.subr.mxu0 0.0
  %139 = vmatpush2.msra.mxu0 0.0
  %140 = vmatprep.subr.mxu0 0.0
  %141 = vmatpush2.msra.mxu0 0.0
  %142 = vmatprep.subr.mxu0 0.0
  %143 = vmatpush2.msra.mxu0 0.0
  %144 = vmatprep.subr.mxu0 0.0
  %145 = vmatpush2.msra.mxu0 0.0
  %146 = vmatprep.subr.mxu0 0.0
  %147 = vmatpush2.msra.mxu0 0.0
  %148 = vmatprep.subr.mxu0 0.0
  %149 = vmatpush2.msra.mxu0 0.0
  %150 = vmatprep.subr.mxu0 0.0
  %151 = vmatpush2.msra.mxu0 0.0
  %152 = vmatprep.subr.mxu0 0.0
  %153 = vmatpush2.msra.mxu0 0.0
  %154 = vmatprep.subr.mxu0 0.0
  %155 = vmatpush2.msra.mxu0 0.0
  %156 = vmatprep.subr.mxu0 0.0
  %157 = vmatpush2.msra.mxu0 0.0
  %158 = vmatprep.subr.mxu0 0.0
  %159 = vmatpush2.msra.mxu0 0.0
  %160 = vmatprep.subr.mxu0 0.0
  %161 = vmatpush2.msra.mxu0 0.0
  %162 = vmatprep.subr.mxu0 0.0
  %163 = vmatpush2.msra.mxu0 0.0
  %164 = vmatprep.subr.mxu0 0.0
  %165 = vmatpush2.msra.mxu0 0.0
  %166 = vmatprep.mubr.f32.mxu0 0.0
  %167 = vmatmul.mubr.f32.gmra.mxu0 %v100
  %v168 = vpop.f32.mrf.mxu0
  %v169 = vadd.f32 %v61, %v168
  %v170 = vpop.f32.mrf.mxu0
  %v171 = vadd.f32 %v65, %v170
  %172 = vdwg.mxu0
  %173 = vmatprep.subr.mxu0 0.0
  %174 = vmatpush1.msra.mxu0 0.0
  %175 = vmatprep.subr.mxu0 0.0
  %176 = vmatpush1.msra.mxu0 0.0
  %177 = vmatprep.subr.mxu0 0.0
  %178 = vmatpush1.msra.mxu0 0.0
  %179 = vmatprep.subr.mxu0 0.0
  %180 = vmatpush1.msra.mxu0 0.0
  %181 = vmatprep.subr.mxu0 0.0
  %182 = vmatpush1.msra.mxu0 0.0
  %183 = vmatprep.subr.mxu0 0.0
  %184 = vmatpush1.msra.mxu0 0.0
  %185 = vmatprep.subr.mxu0 0.0
  %186 = vmatpush1.msra.mxu0 0.0
  %187 = vmatprep.subr.mxu0 0.0
  %188 = vmatpush1.msra.mxu0 0.0
  %189 = vmatprep.subr.mxu0 0.0
  %190 = vmatpush1.msra.mxu0 0.0
  %191 = vmatprep.subr.mxu0 0.0
  %192 = vmatpush1.msra.mxu0 0.0
  %193 = vmatprep.subr.mxu0 0.0
  %194 = vmatpush1.msra.mxu0 0.0
  %195 = vmatprep.subr.mxu0 0.0
  %196 = vmatpush1.msra.mxu0 0.0
  %197 = vmatprep.subr.mxu0 %v51
  %198 = vmatpush1.msra.mxu0 %v50
  %199 = vmatprep.subr.mxu0 %v43
  %200 = vmatpush1.msra.mxu0 %v42
  %201 = vmatprep.subr.mxu0 %v35
  %202 = vmatpush1.msra.mxu0 %v34
  %203 = vmatprep.subr.mxu0 %v27
  %204 = vmatpush1.msra.mxu0 %v26
  %205 = vmatprep.subr.mxu0 0.0
  %206 = vmatpush2.msra.mxu0 0.0
  %207 = vmatprep.subr.mxu0 0.0
  %208 = vmatpush2.msra.mxu0 0.0
  %209 = vmatprep.subr.mxu0 0.0
  %210 = vmatpush2.msra.mxu0 0.0
  %211 = vmatprep.subr.mxu0 0.0
  %212 = vmatpush2.msra.mxu0 0.0
  %213 = vmatprep.subr.mxu0 0.0
  %214 = vmatpush2.msra.mxu0 0.0
  %215 = vmatprep.subr.mxu0 0.0
  %216 = vmatpush2.msra.mxu0 0.0
  %217 = vmatprep.subr.mxu0 0.0
  %218 = vmatpush2.msra.mxu0 0.0
  %219 = vmatprep.subr.mxu0 0.0
  %220 = vmatpush2.msra.mxu0 0.0
  %221 = vmatprep.subr.mxu0 0.0
  %222 = vmatpush2.msra.mxu0 0.0
  %223 = vmatprep.subr.mxu0 0.0
  %224 = vmatpush2.msra.mxu0 0.0
  %225 = vmatprep.subr.mxu0 0.0
  %226 = vmatpush2.msra.mxu0 0.0
  %227 = vmatprep.subr.mxu0 0.0
  %228 = vmatpush2.msra.mxu0 0.0
  %229 = vmatprep.subr.mxu0 0.0
  %230 = vmatpush2.msra.mxu0 0.0
  %231 = vmatprep.subr.mxu0 0.0
  %232 = vmatpush2.msra.mxu0 0.0
  %233 = vmatprep.subr.mxu0 0.0
  %234 = vmatpush2.msra.mxu0 0.0
  %235 = vmatprep.subr.mxu0 0.0
  %236 = vmatpush2.msra.mxu0 0.0
  %237 = vmatprep.mubr.f32.mxu0 0.0
  %238 = vmatmul.mubr.f32.gmra.mxu0 %v100
  %v239 = vpop.f32.mrf.mxu0
  %v240 = vadd.f32 %v69, %v239
  %v241 = vpop.f32.mrf.mxu0
  %v242 = vadd.f32 %v73, %v241
  %243 = vdwg.mxu0
  %244 = vmatprep.subr.mxu0 0.0
  %245 = vmatpush1.msra.mxu0 0.0
  %246 = vmatprep.subr.mxu0 0.0
  %247 = vmatpush1.msra.mxu0 0.0
  %248 = vmatprep.subr.mxu0 0.0
  %249 = vmatpush1.msra.mxu0 0.0
  %250 = vmatprep.subr.mxu0 0.0
  %251 = vmatpush1.msra.mxu0 0.0
  %252 = vmatprep.subr.mxu0 0.0
  %253 = vmatpush1.msra.mxu0 0.0
  %254 = vmatprep.subr.mxu0 0.0
  %255 = vmatpush1.msra.mxu0 0.0
  %256 = vmatprep.subr.mxu0 0.0
  %257 = vmatpush1.msra.mxu0 0.0
  %258 = vmatprep.subr.mxu0 0.0
  %259 = vmatpush1.msra.mxu0 0.0
  %260 = vmatprep.subr.mxu0 0.0
  %261 = vmatpush1.msra.mxu0 0.0
  %262 = vmatprep.subr.mxu0 0.0
  %263 = vmatpush1.msra.mxu0 0.0
  %264 = vmatprep.subr.mxu0 0.0
  %265 = vmatpush1.msra.mxu0 0.0
  %266 = vmatprep.subr.mxu0 0.0
  %267 = vmatpush1.msra.mxu0 0.0
  %268 = vmatprep.subr.mxu0 %v53
  %269 = vmatpush1.msra.mxu0 %v52
  %270 = vmatprep.subr.mxu0 %v45
  %271 = vmatpush1.msra.mxu0 %v44
  %272 = vmatprep.subr.mxu0 %v37
  %273 = vmatpush1.msra.mxu0 %v36
  %274 = vmatprep.subr.mxu0 %v29
  %275 = vmatpush1.msra.mxu0 %v28
  %276 = vmatprep.subr.mxu0 0.0
  %277 = vmatpush2.msra.mxu0 0.0
  %278 = vmatprep.subr.mxu0 0.0
  %279 = vmatpush2.msra.mxu0 0.0
  %280 = vmatprep.subr.mxu0 0.0
  %281 = vmatpush2.msra.mxu0 0.0
  %282 = vmatprep.subr.mxu0 0.0
  %283 = vmatpush2.msra.mxu0 0.0
  %284 = vmatprep.subr.mxu0 0.0
  %285 = vmatpush2.msra.mxu0 0.0
  %286 = vmatprep.subr.mxu0 0.0
  %287 = vmatpush2.msra.mxu0 0.0
  %288 = vmatprep.subr.mxu0 0.0
  %289 = vmatpush2.msra.mxu0 0.0
  %290 = vmatprep.subr.mxu0 0.0
  %291 = vmatpush2.msra.mxu0 0.0
  %292 = vmatprep.subr.mxu0 0.0
  %293 = vmatpush2.msra.mxu0 0.0
  %294 = vmatprep.subr.mxu0 0.0
  %295 = vmatpush2.msra.mxu0 0.0
  %296 = vmatprep.subr.mxu0 0.0
  %297 = vmatpush2.msra.mxu0 0.0
  %298 = vmatprep.subr.mxu0 0.0
  %299 = vmatpush2.msra.mxu0 0.0
  %300 = vmatprep.subr.mxu0 0.0
  %301 = vmatpush2.msra.mxu0 0.0
  %302 = vmatprep.subr.mxu0 0.0
  %303 = vmatpush2.msra.mxu0 0.0
  %304 = vmatprep.subr.mxu0 0.0
  %305 = vmatpush2.msra.mxu0 0.0
  %306 = vmatprep.subr.mxu0 0.0
  %307 = vmatpush2.msra.mxu0 0.0
  %308 = vmatprep.mubr.f32.mxu0 0.0
  %309 = vmatmul.mubr.f32.gmra.mxu0 %v100
  %v310 = vpop.f32.mrf.mxu0
  %v311 = vadd.f32 %v77, %v310
  %v312 = vpop.f32.mrf.mxu0
  %v313 = vadd.f32 %v81, %v312
  %314 = vdwg.mxu0
  %315 = vmatprep.subr.mxu0 0.0
  %316 = vmatpush1.msra.mxu0 0.0
  %317 = vmatprep.subr.mxu0 0.0
  %318 = vmatpush1.msra.mxu0 0.0
  %319 = vmatprep.subr.mxu0 0.0
  %320 = vmatpush1.msra.mxu0 0.0
  %321 = vmatprep.subr.mxu0 0.0
  %322 = vmatpush1.msra.mxu0 0.0
  %323 = vmatprep.subr.mxu0 0.0
  %324 = vmatpush1.msra.mxu0 0.0
  %325 = vmatprep.subr.mxu0 0.0
  %326 = vmatpush1.msra.mxu0 0.0
  %327 = vmatprep.subr.mxu0 0.0
  %328 = vmatpush1.msra.mxu0 0.0
  %329 = vmatprep.subr.mxu0 0.0
  %330 = vmatpush1.msra.mxu0 0.0
  %331 = vmatprep.subr.mxu0 0.0
  %332 = vmatpush1.msra.mxu0 0.0
  %333 = vmatprep.subr.mxu0 0.0
  %334 = vmatpush1.msra.mxu0 0.0
  %335 = vmatprep.subr.mxu0 0.0
  %336 = vmatpush1.msra.mxu0 0.0
  %337 = vmatprep.subr.mxu0 0.0
  %338 = vmatpush1.msra.mxu0 0.0
  %339 = vmatprep.subr.mxu0 %v55
  %340 = vmatpush1.msra.mxu0 %v54
  %341 = vmatprep.subr.mxu0 %v47
  %342 = vmatpush1.msra.mxu0 %v46
  %343 = vmatprep.subr.mxu0 %v39
  %344 = vmatpush1.msra.mxu0 %v38
  %345 = vmatprep.subr.mxu0 %v31
  %346 = vmatpush1.msra.mxu0 %v30
  %347 = vmatprep.subr.mxu0 0.0
  %348 = vmatpush2.msra.mxu0 0.0
  %349 = vmatprep.subr.mxu0 0.0
  %350 = vmatpush2.msra.mxu0 0.0
  %351 = vmatprep.subr.mxu0 0.0
  %352 = vmatpush2.msra.mxu0 0.0
  %353 = vmatprep.subr.mxu0 0.0
  %354 = vmatpush2.msra.mxu0 0.0
  %355 = vmatprep.subr.mxu0 0.0
  %356 = vmatpush2.msra.mxu0 0.0
  %357 = vmatprep.subr.mxu0 0.0
  %358 = vmatpush2.msra.mxu0 0.0
  %359 = vmatprep.subr.mxu0 0.0
  %360 = vmatpush2.msra.mxu0 0.0
  %361 = vmatprep.subr.mxu0 0.0
  %362 = vmatpush2.msra.mxu0 0.0
  %363 = vmatprep.subr.mxu0 0.0
  %364 = vmatpush2.msra.mxu0 0.0
  %365 = vmatprep.subr.mxu0 0.0
  %366 = vmatpush2.msra.mxu0 0.0
  %367 = vmatprep.subr.mxu0 0.0
  %368 = vmatpush2.msra.mxu0 0.0
  %369 = vmatprep.subr.mxu0 0.0
  %370 = vmatpush2.msra.mxu0 0.0
  %371 = vmatprep.subr.mxu0 0.0
  %372 = vmatpush2.msra.mxu0 0.0
  %373 = vmatprep.subr.mxu0 0.0
  %374 = vmatpush2.msra.mxu0 0.0
  %375 = vmatprep.subr.mxu0 0.0
  %376 = vmatpush2.msra.mxu0 0.0
  %377 = vmatprep.subr.mxu0 0.0
  %378 = vmatpush2.msra.mxu0 0.0
  %379 = vmatprep.mubr.f32.mxu0 0.0
  %380 = vmatmul.mubr.f32.gmra.mxu0 %v100
  %v381 = vpop.f32.mrf.mxu0
  %v382 = vadd.f32 %v85, %v381
  %v383 = vpop.f32.mrf.mxu0
  %v384 = vadd.f32 %v89, %v383
  %385 = vdwg.mxu0
  %vm386 = vcmp.ge.f32.partialorder %v169, 0.0
  %vm387 = vcmp.ge.f32.partialorder %v171, 0.0
  %vm388 = vcmp.ge.f32.partialorder %v240, 0.0
  %vm389 = vcmp.ge.f32.partialorder %v242, 0.0
  %vm390 = vcmp.ge.f32.partialorder %v311, 0.0
  %vm391 = vcmp.ge.f32.partialorder %v313, 0.0
  %vm392 = vcmp.ge.f32.partialorder %v382, 0.0
  %vm393 = vcmp.ge.f32.partialorder %v384, 0.0
  %v394 = vmul.f32 %v169, 0.2
  %v395 = vmul.f32 %v171, 0.2
  %v396 = vmul.f32 %v240, 0.2
  %v397 = vmul.f32 %v242, 0.2
  %v398 = vmul.f32 %v311, 0.2
  %v399 = vmul.f32 %v313, 0.2
  %v400 = vmul.f32 %v382, 0.2
  %v401 = vmul.f32 %v384, 0.2
  %v402 = vsel %vm386, %v169, %v394
  %v403 = vsel %vm387, %v171, %v395
  %v404 = vsel %vm388, %v240, %v396
  %v405 = vsel %vm389, %v242, %v397
  %v406 = vsel %vm390, %v311, %v398
  %v407 = vsel %vm391, %v313, %v399
  %v408 = vsel %vm392, %v382, %v400
  %v409 = vsel %vm393, %v384, %v401
  %410 = vst [vmem:[#allocation3] sm:$0xff] 0.0
  %411 = vst [vmem:[#allocation3 + $0x8] sm:$0xff] 0.0
  %412 = vst [vmem:[#allocation2] sm:$0x1] %v402
  %413 = vst [vmem:[#allocation2 + $0x1] sm:$0x1] %v403
  %414 = vst [vmem:[#allocation3] sm:$0x1] %v403
  %415 = vst [vmem:[#allocation2 + $0x2] sm:$0x1] %v404
  %416 = vst [vmem:[#allocation3 + $0x1] sm:$0x1] %v404
  %417 = vst [vmem:[#allocation2 + $0x3] sm:$0x1] %v405
  %418 = vst [vmem:[#allocation3 + $0x2] sm:$0x1] %v405
  %419 = vst [vmem:[#allocation2 + $0x4] sm:$0x1] %v406
  %420 = vst [vmem:[#allocation3 + $0x3] sm:$0x1] %v406
  %421 = vst [vmem:[#allocation2 + $0x5] sm:$0x1] %v407
  %422 = vst [vmem:[#allocation3 + $0x4] sm:$0x1] %v407
  %423 = vst [vmem:[#allocation2 + $0x6] sm:$0x1] %v408
  %424 = vst [vmem:[#allocation3 + $0x5] sm:$0x1] %v408
  %425 = vst [vmem:[#allocation2 + $0x7] sm:$0x1] %v409
  %426 = vst [vmem:[#allocation3 + $0x6] sm:$0x1] %v409
  %427 = vst [vmem:[#allocation2 + $0x7] sm:$0x2] %v402
  %428 = vst [vmem:[#allocation2 + $0x8] sm:$0x2] %v403
  %429 = vst [vmem:[#allocation3 + $0x7] sm:$0x2] %v403
  %430 = vst [vmem:[#allocation2 + $0x9] sm:$0x2] %v404
  %431 = vst [vmem:[#allocation3 + $0x8] sm:$0x2] %v404
  %432 = vst [vmem:[#allocation2 + $0xa] sm:$0x2] %v405
  %433 = vst [vmem:[#allocation3 + $0x9] sm:$0x2] %v405
  %434 = vst [vmem:[#allocation2 + $0xb] sm:$0x2] %v406
  %435 = vst [vmem:[#allocation3 + $0xa] sm:$0x2] %v406
  %436 = vst [vmem:[#allocation2 + $0xc] sm:$0x2] %v407
  %437 = vst [vmem:[#allocation3 + $0xb] sm:$0x2] %v407
  %438 = vst [vmem:[#allocation2 + $0xd] sm:$0x2] %v408
  %439 = vst [vmem:[#allocation3 + $0xc] sm:$0x2] %v408
  %440 = vst [vmem:[#allocation2 + $0xe] sm:$0x2] %v409
  %441 = vst [vmem:[#allocation3 + $0xd] sm:$0x2] %v409
  %v442 = vld [vmem:[#allocation2] sm:$0xff]
  %v443 = vld [vmem:[#allocation3] sm:$0xff]
  %v444 = vld [vmem:[%s3] sm:$0xff]
  %v445 = vld [vmem:[%s3 + $0x8] sm:$0xff]
  %v446 = vld [vmem:[%s3 + $0x10] sm:$0xff]
  %v447 = vld [vmem:[%s3 + $0x18] sm:$0xff]
  %v448 = vld [vmem:[%s3 + $0x20] sm:$0xff]
  %v449 = vld [vmem:[%s3 + $0x28] sm:$0xff]
  %v450 = vld [vmem:[%s3 + $0x30] sm:$0xff]
  %v451 = vld [vmem:[%s3 + $0x38] sm:$0xff]
  %v452 = vld [vmem:[%s3 + $0x40] sm:$0xff]
  %v453 = vld [vmem:[%s3 + $0x48] sm:$0xff]
  %v454 = vld [vmem:[%s3 + $0x50] sm:$0xff]
  %v455 = vld [vmem:[%s3 + $0x58] sm:$0xff]
  %v456 = vld [vmem:[%s3 + $0x60] sm:$0xff]
  %v457 = vld [vmem:[%s3 + $0x68] sm:$0xff]
  %v458 = vld [vmem:[%s3 + $0x70] sm:$0xff]
  %v459 = vld [vmem:[%s3 + $0x78] sm:$0xff]
  %v460 = vld [vmem:[%s4] sm:$0xff]
  %v461 = vld [vmem:[%s4 + $0x8] sm:$0xff]
  %v462 = vld [vmem:[%s4 + $0x10] sm:$0xff]
  %v463 = vld [vmem:[%s4 + $0x18] sm:$0xff]
  %v464 = vld [vmem:[%s4 + $0x20] sm:$0xff]
  %v465 = vld [vmem:[%s4 + $0x28] sm:$0xff]
  %v466 = vld [vmem:[%s4 + $0x30] sm:$0xff]
  %v467 = vld [vmem:[%s4 + $0x38] sm:$0xff]
  %v468 = vld [vmem:[%s4 + $0x40] sm:$0xff]
  %v469 = vld [vmem:[%s4 + $0x48] sm:$0xff]
  %v470 = vld [vmem:[%s4 + $0x50] sm:$0xff]
  %v471 = vld [vmem:[%s4 + $0x58] sm:$0xff]
  %v472 = vld [vmem:[%s4 + $0x60] sm:$0xff]
  %v473 = vld [vmem:[%s4 + $0x68] sm:$0xff]
  %v474 = vld [vmem:[%s4 + $0x70] sm:$0xff]
  %v475 = vld [vmem:[%s4 + $0x78] sm:$0xff]
  %476 = vmatprep.subr.mxu0 0.0
  %477 = vmatpush1.msra.mxu0 %v475
  %478 = vmatprep.subr.mxu0 0.0
  %479 = vmatpush1.msra.mxu0 %v474
  %480 = vmatprep.subr.mxu0 0.0
  %481 = vmatpush1.msra.mxu0 %v473
  %482 = vmatprep.subr.mxu0 0.0
  %483 = vmatpush1.msra.mxu0 %v472
  %484 = vmatprep.subr.mxu0 0.0
  %485 = vmatpush1.msra.mxu0 %v471
  %486 = vmatprep.subr.mxu0 0.0
  %487 = vmatpush1.msra.mxu0 %v470
  %488 = vmatprep.subr.mxu0 0.0
  %489 = vmatpush1.msra.mxu0 %v469
  %490 = vmatprep.subr.mxu0 0.0
  %491 = vmatpush1.msra.mxu0 %v468
  %492 = vmatprep.subr.mxu0 0.0
  %493 = vmatpush1.msra.mxu0 %v467
  %494 = vmatprep.subr.mxu0 0.0
  %495 = vmatpush1.msra.mxu0 %v466
  %496 = vmatprep.subr.mxu0 0.0
  %497 = vmatpush1.msra.mxu0 %v465
  %498 = vmatprep.subr.mxu0 0.0
  %499 = vmatpush1.msra.mxu0 %v464
  %500 = vmatprep.subr.mxu0 0.0
  %501 = vmatpush1.msra.mxu0 %v463
  %502 = vmatprep.subr.mxu0 0.0
  %503 = vmatpush1.msra.mxu0 %v462
  %504 = vmatprep.subr.mxu0 0.0
  %505 = vmatpush1.msra.mxu0 %v461
  %506 = vmatprep.subr.mxu0 0.0
  %507 = vmatpush1.msra.mxu0 %v460
  %508 = vmatprep.subr.mxu0 0.0
  %509 = vmatpush2.msra.mxu0 0.0
  %510 = vmatprep.subr.mxu0 0.0
  %511 = vmatpush2.msra.mxu0 0.0
  %512 = vmatprep.subr.mxu0 0.0
  %513 = vmatpush2.msra.mxu0 0.0
  %514 = vmatprep.subr.mxu0 0.0
  %515 = vmatpush2.msra.mxu0 0.0
  %516 = vmatprep.subr.mxu0 0.0
  %517 = vmatpush2.msra.mxu0 0.0
  %518 = vmatprep.subr.mxu0 0.0
  %519 = vmatpush2.msra.mxu0 0.0
  %520 = vmatprep.subr.mxu0 0.0
  %521 = vmatpush2.msra.mxu0 0.0
  %522 = vmatprep.subr.mxu0 0.0
  %523 = vmatpush2.msra.mxu0 0.0
  %524 = vmatprep.subr.mxu0 0.0
  %525 = vmatpush2.msra.mxu0 0.0
  %526 = vmatprep.subr.mxu0 0.0
  %527 = vmatpush2.msra.mxu0 0.0
  %528 = vmatprep.subr.mxu0 0.0
  %529 = vmatpush2.msra.mxu0 0.0
  %530 = vmatprep.subr.mxu0 0.0
  %531 = vmatpush2.msra.mxu0 0.0
  %532 = vmatprep.subr.mxu0 0.0
  %533 = vmatpush2.msra.mxu0 0.0
  %534 = vmatprep.subr.mxu0 0.0
  %535 = vmatpush2.msra.mxu0 0.0
  %536 = vmatprep.subr.mxu0 0.0
  %537 = vmatpush2.msra.mxu0 0.0
  %538 = vmatprep.subr.mxu0 0.0
  %539 = vmatpush2.msra.mxu0 0.0
  %540 = vmatprep.mubr.f32.mxu0 0.0
  %541 = vmatmul.mubr.f32.gmra.mxu0 %v443
  %v542 = vpop.f32.mrf.mxu0
  %v543 = vadd.f32 0.0, %v542
  %v544 = vpop.f32.mrf.mxu0
  %545 = vdwg.mxu0
  %546 = vmatprep.subr.mxu0 0.0
  %547 = vmatpush1.msra.mxu0 %v459
  %548 = vmatprep.subr.mxu0 0.0
  %549 = vmatpush1.msra.mxu0 %v458
  %550 = vmatprep.subr.mxu0 0.0
  %551 = vmatpush1.msra.mxu0 %v457
  %552 = vmatprep.subr.mxu0 0.0
  %553 = vmatpush1.msra.mxu0 %v456
  %554 = vmatprep.subr.mxu0 0.0
  %555 = vmatpush1.msra.mxu0 %v455
  %556 = vmatprep.subr.mxu0 0.0
  %557 = vmatpush1.msra.mxu0 %v454
  %558 = vmatprep.subr.mxu0 0.0
  %559 = vmatpush1.msra.mxu0 %v453
  %560 = vmatprep.subr.mxu0 0.0
  %561 = vmatpush1.msra.mxu0 %v452
  %562 = vmatprep.subr.mxu0 0.0
  %563 = vmatpush1.msra.mxu0 %v451
  %564 = vmatprep.subr.mxu0 0.0
  %565 = vmatpush1.msra.mxu0 %v450
  %566 = vmatprep.subr.mxu0 0.0
  %567 = vmatpush1.msra.mxu0 %v449
  %568 = vmatprep.subr.mxu0 0.0
  %569 = vmatpush1.msra.mxu0 %v448
  %570 = vmatprep.subr.mxu0 0.0
  %571 = vmatpush1.msra.mxu0 %v447
  %572 = vmatprep.subr.mxu0 0.0
  %573 = vmatpush1.msra.mxu0 %v446
  %574 = vmatprep.subr.mxu0 0.0
  %575 = vmatpush1.msra.mxu0 %v445
  %576 = vmatprep.subr.mxu0 0.0
  %577 = vmatpush1.msra.mxu0 %v444
  %578 = vmatprep.subr.mxu0 0.0
  %579 = vmatpush2.msra.mxu0 0.0
  %580 = vmatprep.subr.mxu0 0.0
  %581 = vmatpush2.msra.mxu0 0.0
  %582 = vmatprep.subr.mxu0 0.0
  %583 = vmatpush2.msra.mxu0 0.0
  %584 = vmatprep.subr.mxu0 0.0
  %585 = vmatpush2.msra.mxu0 0.0
  %586 = vmatprep.subr.mxu0 0.0
  %587 = vmatpush2.msra.mxu0 0.0
  %588 = vmatprep.subr.mxu0 0.0
  %589 = vmatpush2.msra.mxu0 0.0
  %590 = vmatprep.subr.mxu0 0.0
  %591 = vmatpush2.msra.mxu0 0.0
  %592 = vmatprep.subr.mxu0 0.0
  %593 = vmatpush2.msra.mxu0 0.0
  %594 = vmatprep.subr.mxu0 0.0
  %595 = vmatpush2.msra.mxu0 0.0
  %596 = vmatprep.subr.mxu0 0.0
  %597 = vmatpush2.msra.mxu0 0.0
  %598 = vmatprep.subr.mxu0 0.0
  %599 = vmatpush2.msra.mxu0 0.0
  %600 = vmatprep.subr.mxu0 0.0
  %601 = vmatpush2.msra.mxu0 0.0
  %602 = vmatprep.subr.mxu0 0.0
  %603 = vmatpush2.msra.mxu0 0.0
  %604 = vmatprep.subr.mxu0 0.0
  %605 = vmatpush2.msra.mxu0 0.0
  %606 = vmatprep.subr.mxu0 0.0
  %607 = vmatpush2.msra.mxu0 0.0
  %608 = vmatprep.subr.mxu0 0.0
  %609 = vmatpush2.msra.mxu0 0.0
  %610 = vmatprep.mubr.f32.mxu0 0.0
  %611 = vmatmul.mubr.f32.gmra.mxu0 %v442
  %v612 = vpop.f32.mrf.mxu0
  %v613 = vadd.f32 %v543, %v612
  %v614 = vpop.f32.mrf.mxu0
  %615 = vdwg.mxu0
  %v616 = vld [vmem:[%s5] sm:$0x1]
  %v618 = vlaneseq
  %v619 = vshrl.u32 %v618, 7
  %v620 = vsub.s32 0, %v619
  %v621 = vrot.slane %v616, %v620
  %v623 = vadd.f32 %v613, %v621
  %v624 = vsub.f32 0.0, %v623
  %v625 = vmul.f32 %v624, 1.442695
  %v626 = vpow.pop %v625
  %v627 = vadd.f32 %v626, 1.0
  %v628 = vrcp.pop %v627
  %v629 = vmul.f32 1.0, %v628
  %630 = vst.msk [vmem:[%s6] sm:$0xff] %vm98, %v629
  %v631 = vld [vmem:[#allocation2 + $0x8] sm:$0xff]
  %v632 = vld [vmem:[#allocation3 + $0x8] sm:$0xff]
  %v633 = vld [vmem:[%s3] sm:$0xff]
  %v634 = vld [vmem:[%s3 + $0x8] sm:$0xff]
  %v635 = vld [vmem:[%s3 + $0x10] sm:$0xff]
  %v636 = vld [vmem:[%s3 + $0x18] sm:$0xff]
  %v637 = vld [vmem:[%s3 + $0x20] sm:$0xff]
  %v638 = vld [vmem:[%s3 + $0x28] sm:$0xff]
  %v639 = vld [vmem:[%s3 + $0x30] sm:$0xff]
  %v640 = vld [vmem:[%s3 + $0x38] sm:$0xff]
  %v641 = vld [vmem:[%s3 + $0x40] sm:$0xff]
  %v642 = vld [vmem:[%s3 + $0x48] sm:$0xff]
  %v643 = vld [vmem:[%s3 + $0x50] sm:$0xff]
  %v644 = vld [vmem:[%s3 + $0x58] sm:$0xff]
  %v645 = vld [vmem:[%s3 + $0x60] sm:$0xff]
  %v646 = vld [vmem:[%s3 + $0x68] sm:$0xff]
  %v647 = vld [vmem:[%s3 + $0x70] sm:$0xff]
  %v648 = vld [vmem:[%s3 + $0x78] sm:$0xff]
  %v649 = vld [vmem:[%s4] sm:$0xff]
  %v650 = vld [vmem:[%s4 + $0x8] sm:$0xff]
  %v651 = vld [vmem:[%s4 + $0x10] sm:$0xff]
  %v652 = vld [vmem:[%s4 + $0x18] sm:$0xff]
  %v653 = vld [vmem:[%s4 + $0x20] sm:$0xff]
  %v654 = vld [vmem:[%s4 + $0x28] sm:$0xff]
  %v655 = vld [vmem:[%s4 + $0x30] sm:$0xff]
  %v656 = vld [vmem:[%s4 + $0x38] sm:$0xff]
  %v657 = vld [vmem:[%s4 + $0x40] sm:$0xff]
  %v658 = vld [vmem:[%s4 + $0x48] sm:$0xff]
  %v659 = vld [vmem:[%s4 + $0x50] sm:$0xff]
  %v660 = vld [vmem:[%s4 + $0x58] sm:$0xff]
  %v661 = vld [vmem:[%s4 + $0x60] sm:$0xff]
  %v662 = vld [vmem:[%s4 + $0x68] sm:$0xff]
  %v663 = vld [vmem:[%s4 + $0x70] sm:$0xff]
  %v664 = vld [vmem:[%s4 + $0x78] sm:$0xff]
  %665 = vmatprep.subr.mxu0 0.0
  %666 = vmatpush1.msra.mxu0 %v664
  %667 = vmatprep.subr.mxu0 0.0
  %668 = vmatpush1.msra.mxu0 %v663
  %669 = vmatprep.subr.mxu0 0.0
  %670 = vmatpush1.msra.mxu0 %v662
  %671 = vmatprep.subr.mxu0 0.0
  %672 = vmatpush1.msra.mxu0 %v661
  %673 = vmatprep.subr.mxu0 0.0
  %674 = vmatpush1.msra.mxu0 %v660
  %675 = vmatprep.subr.mxu0 0.0
  %676 = vmatpush1.msra.mxu0 %v659
  %677 = vmatprep.subr.mxu0 0.0
  %678 = vmatpush1.msra.mxu0 %v658
  %679 = vmatprep.subr.mxu0 0.0
  %680 = vmatpush1.msra.mxu0 %v657
  %681 = vmatprep.subr.mxu0 0.0
  %682 = vmatpush1.msra.mxu0 %v656
  %683 = vmatprep.subr.mxu0 0.0
  %684 = vmatpush1.msra.mxu0 %v655
  %685 = vmatprep.subr.mxu0 0.0
  %686 = vmatpush1.msra.mxu0 %v654
  %687 = vmatprep.subr.mxu0 0.0
  %688 = vmatpush1.msra.mxu0 %v653
  %689 = vmatprep.subr.mxu0 0.0
  %690 = vmatpush1.msra.mxu0 %v652
  %691 = vmatprep.subr.mxu0 0.0
  %692 = vmatpush1.msra.mxu0 %v651
  %693 = vmatprep.subr.mxu0 0.0
  %694 = vmatpush1.msra.mxu0 %v650
  %695 = vmatprep.subr.mxu0 0.0
  %696 = vmatpush1.msra.mxu0 %v649
  %697 = vmatprep.subr.mxu0 0.0
  %698 = vmatpush2.msra.mxu0 0.0
  %699 = vmatprep.subr.mxu0 0.0
  %700 = vmatpush2.msra.mxu0 0.0
  %701 = vmatprep.subr.mxu0 0.0
  %702 = vmatpush2.msra.mxu0 0.0
  %703 = vmatprep.subr.mxu0 0.0
  %704 = vmatpush2.msra.mxu0 0.0
  %705 = vmatprep.subr.mxu0 0.0
  %706 = vmatpush2.msra.mxu0 0.0
  %707 = vmatprep.subr.mxu0 0.0
  %708 = vmatpush2.msra.mxu0 0.0
  %709 = vmatprep.subr.mxu0 0.0
  %710 = vmatpush2.msra.mxu0 0.0
  %711 = vmatprep.subr.mxu0 0.0
  %712 = vmatpush2.msra.mxu0 0.0
  %713 = vmatprep.subr.mxu0 0.0
  %714 = vmatpush2.msra.mxu0 0.0
  %715 = vmatprep.subr.mxu0 0.0
  %716 = vmatpush2.msra.mxu0 0.0
  %717 = vmatprep.subr.mxu0 0.0
  %718 = vmatpush2.msra.mxu0 0.0
  %719 = vmatprep.subr.mxu0 0.0
  %720 = vmatpush2.msra.mxu0 0.0
  %721 = vmatprep.subr.mxu0 0.0
  %722 = vmatpush2.msra.mxu0 0.0
  %723 = vmatprep.subr.mxu0 0.0
  %724 = vmatpush2.msra.mxu0 0.0
  %725 = vmatprep.subr.mxu0 0.0
  %726 = vmatpush2.msra.mxu0 0.0
  %727 = vmatprep.subr.mxu0 0.0
  %728 = vmatpush2.msra.mxu0 0.0
  %729 = vmatprep.mubr.f32.mxu0 0.0
  %730 = vmatmul.mubr.f32.gmra.mxu0 %v632
  %v731 = vpop.f32.mrf.mxu0
  %v732 = vadd.f32 0.0, %v731
  %v733 = vpop.f32.mrf.mxu0
  %734 = vdwg.mxu0
  %735 = vmatprep.subr.mxu0 0.0
  %736 = vmatpush1.msra.mxu0 %v648
  %737 = vmatprep.subr.mxu0 0.0
  %738 = vmatpush1.msra.mxu0 %v647
  %739 = vmatprep.subr.mxu0 0.0
  %740 = vmatpush1.msra.mxu0 %v646
  %741 = vmatprep.subr.mxu0 0.0
  %742 = vmatpush1.msra.mxu0 %v645
  %743 = vmatprep.subr.mxu0 0.0
  %744 = vmatpush1.msra.mxu0 %v644
  %745 = vmatprep.subr.mxu0 0.0
  %746 = vmatpush1.msra.mxu0 %v643
  %747 = vmatprep.subr.mxu0 0.0
  %748 = vmatpush1.msra.mxu0 %v642
  %749 = vmatprep.subr.mxu0 0.0
  %750 = vmatpush1.msra.mxu0 %v641
  %751 = vmatprep.subr.mxu0 0.0
  %752 = vmatpush1.msra.mxu0 %v640
  %753 = vmatprep.subr.mxu0 0.0
  %754 = vmatpush1.msra.mxu0 %v639
  %755 = vmatprep.subr.mxu0 0.0
  %756 = vmatpush1.msra.mxu0 %v638
  %757 = vmatprep.subr.mxu0 0.0
  %758 = vmatpush1.msra.mxu0 %v637
  %759 = vmatprep.subr.mxu0 0.0
  %760 = vmatpush1.msra.mxu0 %v636
  %761 = vmatprep.subr.mxu0 0.0
  %762 = vmatpush1.msra.mxu0 %v635
  %763 = vmatprep.subr.mxu0 0.0
  %764 = vmatpush1.msra.mxu0 %v634
  %765 = vmatprep.subr.mxu0 0.0
  %766 = vmatpush1.msra.mxu0 %v633
  %767 = vmatprep.subr.mxu0 0.0
  %768 = vmatpush2.msra.mxu0 0.0
  %769 = vmatprep.subr.mxu0 0.0
  %770 = vmatpush2.msra.mxu0 0.0
  %771 = vmatprep.subr.mxu0 0.0
  %772 = vmatpush2.msra.mxu0 0.0
  %773 = vmatprep.subr.mxu0 0.0
  %774 = vmatpush2.msra.mxu0 0.0
  %775 = vmatprep.subr.mxu0 0.0
  %776 = vmatpush2.msra.mxu0 0.0
  %777 = vmatprep.subr.mxu0 0.0
  %778 = vmatpush2.msra.mxu0 0.0
  %779 = vmatprep.subr.mxu0 0.0
  %780 = vmatpush2.msra.mxu0 0.0
  %781 = vmatprep.subr.mxu0 0.0
  %782 = vmatpush2.msra.mxu0 0.0
  %783 = vmatprep.subr.mxu0 0.0
  %784 = vmatpush2.msra.mxu0 0.0
  %785 = vmatprep.subr.mxu0 0.0
  %786 = vmatpush2.msra.mxu0 0.0
  %787 = vmatprep.subr.mxu0 0.0
  %788 = vmatpush2.msra.mxu0 0.0
  %789 = vmatprep.subr.mxu0 0.0
  %790 = vmatpush2.msra.mxu0 0.0
  %791 = vmatprep.subr.mxu0 0.0
  %792 = vmatpush2.msra.mxu0 0.0
  %793 = vmatprep.subr.mxu0 0.0
  %794 = vmatpush2.msra.mxu0 0.0
  %795 = vmatprep.subr.mxu0 0.0
  %796 = vmatpush2.msra.mxu0 0.0
  %797 = vmatprep.subr.mxu0 0.0
  %798 = vmatpush2.msra.mxu0 0.0
  %799 = vmatprep.mubr.f32.mxu0 0.0
  %800 = vmatmul.mubr.f32.gmra.mxu0 %v631
  %v801 = vpop.f32.mrf.mxu0
  %v802 = vadd.f32 %v732, %v801
  %v803 = vpop.f32.mrf.mxu0
  %804 = vdwg.mxu0
  %v805 = vld [vmem:[%s5] sm:$0x1]
  %v807 = vlaneseq
  %v808 = vshrl.u32 %v807, 7
  %v809 = vsub.s32 0, %v808
  %v810 = vrot.slane %v805, %v809
  %v812 = vadd.f32 %v802, %v810
  %v813 = vsub.f32 0.0, %v812
  %v814 = vmul.f32 %v813, 1.442695
  %v815 = vpow.pop %v814
  %v816 = vadd.f32 %v815, 1.0
  %v817 = vrcp.pop %v816
  %v818 = vmul.f32 1.0, %v817
  %819 = vst.msk [vmem:[%s6 + $0x8] sm:$0xff] %vm98, %v818
  // Predicated region
  $region26: #{decoder_forward.1} parent=0 // pred_check
    _
  $region27: #{decoder_forward.1} parent=0 // pred_check_branch
    %821 = sbr.rel (0) target = $region29
  $region28: #{decoder_forward.1} parent=0 // pred_region
    _
  $region29: #{decoder_forward.1} parent=0 // pred_fallthru
    _
  // Predicated region
  $region30: #{decoder_forward.1} parent=0 // pred_check
    _
  $region31: #{decoder_forward.1} parent=0 // pred_check_branch
    %823 = sbr.rel (0) target = $region33
  $region32: #{decoder_forward.1} parent=0 // pred_region
    _
  $region33: #{decoder_forward.1} parent=0 // pred_fallthru
    _

</llo_original>
